<compile_context>
chip_gen: v5e
topology: v5e:2x2
jax: 0.10.0
libtpu: 0.0.40
codegen_flags: <defaults>
</compile_context>

<pallas_src>
import functools

import jax
import jax.numpy as jnp
import numpy as np
from jax import lax
from jax.experimental import pallas as pl
from jax.experimental.pallas import tpu as pltpu


def _lstm_chunk_kernel(xp_ref, whh_ref, h0_ref, c0_ref,
                       out_ref, cN_ref, h_sc, c_sc,
                       *, chunk, hidden_size, unroll):
    """One grid step = `chunk` LSTM time steps.

    xp_ref : (T, B, 4H)  precomputed  x_t @ W_ih^T + b_ih + b_hh  (this chunk)
    whh_ref: (H, 4H)     W_hh^T (loop invariant)
    h0_ref : (B, H)      initial hidden state (used only at grid step 0)
    c0_ref : (B, H)      initial cell state   (used only at grid step 0)
    out_ref: (T, B, H)   h_t for every step of this chunk
    cN_ref : (B, H)      final cell state (resident; written at last grid step)
    h_sc   : (B, H)      VMEM scratch carrying h across grid steps
    c_sc   : (B, H)      VMEM scratch carrying c across grid steps
    """
    H = hidden_size
    t0 = pl.program_id(0)

    @pl.when(t0 == 0)
    def _():
        h_sc[...] = h0_ref[...].astype(jnp.float32)
        c_sc[...] = c0_ref[...].astype(jnp.float32)

    # Loop-invariant load, hoisted once (JAX does not CSE inside the loop).
    whh = whh_ref[...]                                        # (H, 4H)

    def step(t, carry):
        h, c = carry
        # gates = xp[t] + h @ W_hh^T   -> (B, 4H); torch gate order [i, f, g, o]
        gates = (xp_ref[t].astype(jnp.float32)
                 + jnp.dot(h.astype(whh.dtype), whh,
                           preferred_element_type=jnp.float32))
        # One full-width (128-lane) sigmoid push instead of three 32-lane ones.
        sig = jax.nn.sigmoid(gates)
        i_g = sig[:, 0 * H:1 * H]
        f_g = sig[:, 1 * H:2 * H]
        o_g = sig[:, 3 * H:4 * H]
        g_g = jnp.tanh(gates[:, 2 * H:3 * H])
        c_new = f_g * c + i_g * g_g
        h_new = o_g * jnp.tanh(c_new)
        out_ref[t] = h_new.astype(out_ref.dtype)              # output[t] = h_t
        return h_new, c_new

    h_f, c_f = lax.fori_loop(0, chunk, step, (h_sc[...], c_sc[...]),
                             unroll=unroll)
    h_sc[...] = h_f
    c_sc[...] = c_f

    @pl.when(t0 == pl.num_programs(0) - 1)
    def _():
        cN_ref[...] = c_f


def _pick_chunk(seq_len, max_chunk=64):
    """Largest divisor of seq_len that is <= max_chunk (so no time padding)."""
    for c in range(min(seq_len, max_chunk), 0, -1):
        if seq_len % c == 0:
            return c
    return 1


def lstm_forward_pallas(xp, w_hh, h0, c0):
    """xp: (S, B, 4H); w_hh: (4H, H); h0/c0: (B, H).  Returns (out, c_n)."""
    S, B, G = xp.shape
    H = h0.shape[-1]
    assert G == 4 * H

    whh_t = jnp.transpose(w_hh).astype(xp.dtype)              # (H, 4H)

    T = _pick_chunk(S)
    num_chunks = S // T
    kernel = functools.partial(_lstm_chunk_kernel,
                               chunk=T, hidden_size=H,
                               unroll=min(T, 8))

    grid_spec = pltpu.PrefetchScalarGridSpec(
        num_scalar_prefetch=0,
        grid=(num_chunks,),
        in_specs=[
            pl.BlockSpec((T, B, 4 * H), lambda t: (t, 0, 0)),   # xp chunk
            pl.BlockSpec((H, 4 * H), lambda t: (0, 0)),         # W_hh^T
            pl.BlockSpec((B, H), lambda t: (0, 0)),             # h0
            pl.BlockSpec((B, H), lambda t: (0, 0)),             # c0
        ],
        out_specs=[
            pl.BlockSpec((T, B, H), lambda t: (t, 0, 0)),       # output chunk
            pl.BlockSpec((B, H), lambda t: (0, 0)),             # c_n (resident)
        ],
        scratch_shapes=[
            pltpu.VMEM((B, H), jnp.float32),                    # h carry
            pltpu.VMEM((B, H), jnp.float32),                    # c carry
        ],
    )

    out, c_n = pl.pallas_call(
        kernel,
        grid_spec=grid_spec,
        out_shape=(
            jax.ShapeDtypeStruct((S, B, H), jnp.float32),
            jax.ShapeDtypeStruct((B, H), jnp.float32),
        ),
        compiler_params=pltpu.CompilerParams(
            dimension_semantics=("arbitrary",),                 # sequential recurrence
        ),
    )(xp, whh_t, h0, c0)
    return out, c_n


def encoder_forward(params, token_ids, hidden, matmul_dtype=jnp.float32):
    """Equivalent of Encoder.forward(input, hidden).

    token_ids: (S, B) int32; hidden = (h0, c0) each (1, B, H).
    Returns (output (S, B, H), (h_n, c_n) each (1, B, H)).
    `matmul_dtype=jnp.bfloat16` is the production choice (f32 accumulation is
    kept inside the kernel); f32 is used here for exact parity with the f32
    reference at toy shapes.
    """
    h0, c0 = hidden

    # Fused embedding lookup + input projection (one small matmul + row gather):
    #   (embedding @ W_ih^T + b)[ids]  ==  embedding[ids] @ W_ih^T + b
    proj_table = (jnp.dot(params["embedding"], params["w_ih"].T)
                  + (params["b_ih"] + params["b_hh"]))        # (vocab, 4H)
    xp = jnp.take(proj_table, token_ids, axis=0)              # (S, B, 4H)
    xp = xp.astype(matmul_dtype)

    out, c_n = lstm_forward_pallas(xp, params["w_hh"].astype(matmul_dtype),
                                   h0[0], c0[0])

    h_n = out[-1]                         # h_n is the last time step's output
    return out, (h_n[None], c_n[None])


def _reference_forward(params, token_ids, hidden):
    """Pure-JAX reference matching torch.nn.LSTM semantics."""
    embedded = jnp.take(params["embedding"], token_ids, axis=0)
    h0, c0 = hidden
    H = h0.shape[-1]
    w_ih_t = params["w_ih"].T
    w_hh_t = params["w_hh"].T
    bias = params["b_ih"] + params["b_hh"]

    def step(carry, x_t):
        h, c = carry
        gates = x_t @ w_ih_t + h @ w_hh_t + bias
        i = jax.nn.sigmoid(gates[:, 0 * H:1 * H])
        f = jax.nn.sigmoid(gates[:, 1 * H:2 * H])
        g = jnp.tanh(gates[:, 2 * H:3 * H])
        o = jax.nn.sigmoid(gates[:, 3 * H:4 * H])
        c_new = f * c + i * g
        h_new = o * jnp.tanh(c_new)
        return (h_new, c_new), h_new

    (h_n, c_n), out = lax.scan(step, (h0[0], c0[0]), embedded)
    return out, (h_n[None], c_n[None])


def init_params(key, input_size, hidden_size, embedding_dim):
    k_emb, k_wih, k_whh, k_bih, k_bhh = jax.random.split(key, 5)
    bound = 1.0 / jnp.sqrt(hidden_size)
    return {
        "embedding": jax.random.normal(k_emb, (input_size, embedding_dim),
                                       jnp.float32),
        "w_ih": jax.random.uniform(k_wih, (4 * hidden_size, embedding_dim),
                                   jnp.float32, -bound, bound),
        "w_hh": jax.random.uniform(k_whh, (4 * hidden_size, hidden_size),
                                   jnp.float32, -bound, bound),
        "b_ih": jax.random.uniform(k_bih, (4 * hidden_size,),
                                   jnp.float32, -bound, bound),
        "b_hh": jax.random.uniform(k_bhh, (4 * hidden_size,),
                                   jnp.float32, -bound, bound),
    }


if __name__ == "__main__":
    INPUT_SIZE = 16      # vocab size
    HIDDEN_SIZE = 32
    EMBEDDING_DIM = 32
    SEQ_LEN = 8
    BATCH = 2

    key = jax.random.PRNGKey(0)
    k_param, k_tok = jax.random.split(key)

    params = init_params(k_param, INPUT_SIZE, HIDDEN_SIZE, EMBEDDING_DIM)
    token_ids = jax.random.randint(k_tok, (SEQ_LEN, BATCH), 0, INPUT_SIZE,
                                   dtype=jnp.int32)
    hidden0 = (jnp.zeros((1, BATCH, HIDDEN_SIZE), jnp.float32),
               jnp.zeros((1, BATCH, HIDDEN_SIZE), jnp.float32))

    out, (h_n, c_n) = jax.jit(encoder_forward)(params, token_ids, hidden0)
    jax.block_until_ready((out, h_n, c_n))

    ref_out, (ref_h, ref_c) = _reference_forward(params, token_ids, hidden0)
    np.testing.assert_allclose(np.asarray(out), np.asarray(ref_out),
                               rtol=1e-5, atol=1e-5)
    np.testing.assert_allclose(np.asarray(h_n), np.asarray(ref_h),
                               rtol=1e-5, atol=1e-5)
    np.testing.assert_allclose(np.asarray(c_n), np.asarray(ref_c),
                               rtol=1e-5, atol=1e-5)

    print("KERNEL_OK")
</pallas_src>

<mosaic_0001>
module attributes {stable_mosaic.version = 11 : i64} {
  func.func @_lstm_chunk_kernel(%arg0: i32, %arg1: memref<8x2x128xf32, #tpu.memory_space<vmem>>, %arg2: memref<32x128xf32, #tpu.memory_space<vmem>>, %arg3: memref<2x32xf32, #tpu.memory_space<vmem>>, %arg4: memref<2x32xf32, #tpu.memory_space<vmem>>, %arg5: memref<8x2x32xf32, #tpu.memory_space<vmem>>, %arg6: memref<2x32xf32, #tpu.memory_space<vmem>>, %arg7: memref<2x32xf32, #tpu.memory_space<vmem>>, %arg8: memref<2x32xf32, #tpu.memory_space<vmem>>) attributes {dimension_semantics = [#tpu.dimension_semantics<arbitrary>], iteration_bounds = array<i64: 1>, scalar_prefetch = 0 : i64, scratch_operands = 2 : i64, tpu.core_type = #tpu.core_type<tc>, window_params = [{transform_indices = @transform_0, window_bounds = array<i64: 8, 2, 128>}, {pipeline_mode = #tpu.pipeline_mode<synchronous>, transform_indices = @transform_1, window_bounds = array<i64: 32, 128>}, {pipeline_mode = #tpu.pipeline_mode<synchronous>, transform_indices = @transform_2, window_bounds = array<i64: 2, 32>}, {pipeline_mode = #tpu.pipeline_mode<synchronous>, transform_indices = @transform_3, window_bounds = array<i64: 2, 32>}, {transform_indices = @transform_4, window_bounds = array<i64: 8, 2, 32>}, {pipeline_mode = #tpu.pipeline_mode<synchronous>, transform_indices = @transform_5, window_bounds = array<i64: 2, 32>}]} {
    %c0_i32 = arith.constant 0 : i32
    %0 = arith.cmpi eq, %arg0, %c0_i32 : i32
    %1 = arith.extui %0 : i1 to i32
    %c0_i32_0 = arith.constant 0 : i32
    %2 = arith.cmpi ne, %1, %c0_i32_0 : i32
    scf.if %2 {
      %c0_60 = arith.constant 0 : index
      %c0_61 = arith.constant 0 : index
      %203 = vector.load %arg3[%c0_60, %c0_61] : memref<2x32xf32, #tpu.memory_space<vmem>>, vector<2x32xf32>
      %c0_62 = arith.constant 0 : index
      %c0_63 = arith.constant 0 : index
      %204 = vector.load %arg7[%c0_62, %c0_63] : memref<2x32xf32, #tpu.memory_space<vmem>>, vector<2x32xf32>
      tpu.vector_store %arg7[%c0_62, %c0_63], %203 {strides = array<i32>} : memref<2x32xf32, #tpu.memory_space<vmem>>, vector<2x32xf32>,
      %c0_64 = arith.constant 0 : index
      %c0_65 = arith.constant 0 : index
      %205 = vector.load %arg4[%c0_64, %c0_65] : memref<2x32xf32, #tpu.memory_space<vmem>>, vector<2x32xf32>
      %c0_66 = arith.constant 0 : index
      %c0_67 = arith.constant 0 : index
      %206 = vector.load %arg8[%c0_66, %c0_67] : memref<2x32xf32, #tpu.memory_space<vmem>>, vector<2x32xf32>
      tpu.vector_store %arg8[%c0_66, %c0_67], %205 {strides = array<i32>} : memref<2x32xf32, #tpu.memory_space<vmem>>, vector<2x32xf32>,
    } else {
    }
    %c0 = arith.constant 0 : index
    %c0_1 = arith.constant 0 : index
    %3 = vector.load %arg2[%c0, %c0_1] : memref<32x128xf32, #tpu.memory_space<vmem>>, vector<32x128xf32>
    %c0_2 = arith.constant 0 : index
    %c0_3 = arith.constant 0 : index
    %4 = vector.load %arg7[%c0_2, %c0_3] : memref<2x32xf32, #tpu.memory_space<vmem>>, vector<2x32xf32>
    %c0_4 = arith.constant 0 : index
    %c0_5 = arith.constant 0 : index
    %5 = vector.load %arg8[%c0_4, %c0_5] : memref<2x32xf32, #tpu.memory_space<vmem>>, vector<2x32xf32>
    %c0_i32_6 = arith.constant 0 : i32
    %6 = arith.index_cast %c0_i32_6 : i32 to index
    %c0_7 = arith.constant 0 : index
    %c0_8 = arith.constant 0 : index
    %7 = vector.load %arg1[%6, %c0_7, %c0_8] : memref<8x2x128xf32, #tpu.memory_space<vmem>>, vector<1x2x128xf32>
    %8 = vector.shape_cast %7 : vector<1x2x128xf32> to vector<2x128xf32>
    %cst = arith.constant dense<0.000000e+00> : vector<2x128xf32>
    %9 = tpu.matmul %4, %3, %cst {dimension_numbers = #tpu.dot_dimension_numbers<[1], [0], [0], [1], [0, 0, 1, 1], [], []>} : vector<2x32xf32>, vector<32x128xf32>, vector<2x128xf32> -> vector<2x128xf32>
    %10 = arith.addf %8, %9 : vector<2x128xf32>
    %11 = arith.negf %10 : vector<2x128xf32>
    %12 = math.exp %11 : vector<2x128xf32>
    %cst_9 = arith.constant 1.000000e+00 : f32
    %13 = vector.broadcast %cst_9 : f32 to vector<2x128xf32>
    %14 = arith.addf %13, %12 : vector<2x128xf32>
    %15 = arith.divf %13, %14 : vector<2x128xf32>
    %16 = vector.extract_strided_slice %15 {offsets = [0, 0], sizes = [2, 32], strides = [1, 1]} : vector<2x128xf32> to vector<2x32xf32>
    %17 = vector.extract_strided_slice %15 {offsets = [0, 32], sizes = [2, 32], strides = [1, 1]} : vector<2x128xf32> to vector<2x32xf32>
    %18 = vector.extract_strided_slice %15 {offsets = [0, 96], sizes = [2, 32], strides = [1, 1]} : vector<2x128xf32> to vector<2x32xf32>
    %19 = vector.extract_strided_slice %10 {offsets = [0, 64], sizes = [2, 32], strides = [1, 1]} : vector<2x128xf32> to vector<2x32xf32>
    %20 = math.tanh %19 : vector<2x32xf32>
    %21 = arith.mulf %17, %5 : vector<2x32xf32>
    %22 = arith.mulf %16, %20 : vector<2x32xf32>
    %23 = arith.addf %21, %22 : vector<2x32xf32>
    %24 = math.tanh %23 : vector<2x32xf32>
    %25 = arith.mulf %18, %24 : vector<2x32xf32>
    %26 = arith.index_cast %c0_i32_6 : i32 to index
    %c0_10 = arith.constant 0 : index
    %c0_11 = arith.constant 0 : index
    %27 = vector.load %arg5[%26, %c0_10, %c0_11] : memref<8x2x32xf32, #tpu.memory_space<vmem>>, vector<1x2x32xf32>
    %28 = vector.shape_cast %27 : vector<1x2x32xf32> to vector<2x32xf32>
    %29 = vector.shape_cast %25 : vector<2x32xf32> to vector<1x2x32xf32>
    tpu.vector_store %arg5[%26, %c0_10, %c0_11], %29 {strides = array<i32>} : memref<8x2x32xf32, #tpu.memory_space<vmem>>, vector<1x2x32xf32>,
    %c1_i32 = arith.constant 1 : i32
    %30 = arith.index_cast %c1_i32 : i32 to index
    %c0_12 = arith.constant 0 : index
    %c0_13 = arith.constant 0 : index
    %31 = vector.load %arg1[%30, %c0_12, %c0_13] : memref<8x2x128xf32, #tpu.memory_space<vmem>>, vector<1x2x128xf32>
    %32 = vector.shape_cast %31 : vector<1x2x128xf32> to vector<2x128xf32>
    %cst_14 = arith.constant dense<0.000000e+00> : vector<2x128xf32>
    %33 = tpu.matmul %25, %3, %cst_14 {dimension_numbers = #tpu.dot_dimension_numbers<[1], [0], [0], [1], [0, 0, 1, 1], [], []>} : vector<2x32xf32>, vector<32x128xf32>, vector<2x128xf32> -> vector<2x128xf32>
    %34 = arith.addf %32, %33 : vector<2x128xf32>
    %35 = arith.negf %34 : vector<2x128xf32>
    %36 = math.exp %35 : vector<2x128xf32>
    %cst_15 = arith.constant 1.000000e+00 : f32
    %37 = vector.broadcast %cst_15 : f32 to vector<2x128xf32>
    %38 = arith.addf %37, %36 : vector<2x128xf32>
    %39 = arith.divf %37, %38 : vector<2x128xf32>
    %40 = vector.extract_strided_slice %39 {offsets = [0, 0], sizes = [2, 32], strides = [1, 1]} : vector<2x128xf32> to vector<2x32xf32>
    %41 = vector.extract_strided_slice %39 {offsets = [0, 32], sizes = [2, 32], strides = [1, 1]} : vector<2x128xf32> to vector<2x32xf32>
    %42 = vector.extract_strided_slice %39 {offsets = [0, 96], sizes = [2, 32], strides = [1, 1]} : vector<2x128xf32> to vector<2x32xf32>
    %43 = vector.extract_strided_slice %34 {offsets = [0, 64], sizes = [2, 32], strides = [1, 1]} : vector<2x128xf32> to vector<2x32xf32>
    %44 = math.tanh %43 : vector<2x32xf32>
    %45 = arith.mulf %41, %23 : vector<2x32xf32>
    %46 = arith.mulf %40, %44 : vector<2x32xf32>
    %47 = arith.addf %45, %46 : vector<2x32xf32>
    %48 = math.tanh %47 : vector<2x32xf32>
    %49 = arith.mulf %42, %48 : vector<2x32xf32>
    %50 = arith.index_cast %c1_i32 : i32 to index
    %c0_16 = arith.constant 0 : index
    %c0_17 = arith.constant 0 : index
    %51 = vector.load %arg5[%50, %c0_16, %c0_17] : memref<8x2x32xf32, #tpu.memory_space<vmem>>, vector<1x2x32xf32>
    %52 = vector.shape_cast %51 : vector<1x2x32xf32> to vector<2x32xf32>
    %53 = vector.shape_cast %49 : vector<2x32xf32> to vector<1x2x32xf32>
    tpu.vector_store %arg5[%50, %c0_16, %c0_17], %53 {strides = array<i32>} : memref<8x2x32xf32, #tpu.memory_space<vmem>>, vector<1x2x32xf32>,
    %c2_i32 = arith.constant 2 : i32
    %54 = arith.index_cast %c2_i32 : i32 to index
    %c0_18 = arith.constant 0 : index
    %c0_19 = arith.constant 0 : index
    %55 = vector.load %arg1[%54, %c0_18, %c0_19] : memref<8x2x128xf32, #tpu.memory_space<vmem>>, vector<1x2x128xf32>
    %56 = vector.shape_cast %55 : vector<1x2x128xf32> to vector<2x128xf32>
    %cst_20 = arith.constant dense<0.000000e+00> : vector<2x128xf32>
    %57 = tpu.matmul %49, %3, %cst_20 {dimension_numbers = #tpu.dot_dimension_numbers<[1], [0], [0], [1], [0, 0, 1, 1], [], []>} : vector<2x32xf32>, vector<32x128xf32>, vector<2x128xf32> -> vector<2x128xf32>
    %58 = arith.addf %56, %57 : vector<2x128xf32>
    %59 = arith.negf %58 : vector<2x128xf32>
    %60 = math.exp %59 : vector<2x128xf32>
    %cst_21 = arith.constant 1.000000e+00 : f32
    %61 = vector.broadcast %cst_21 : f32 to vector<2x128xf32>
    %62 = arith.addf %61, %60 : vector<2x128xf32>
    %63 = arith.divf %61, %62 : vector<2x128xf32>
    %64 = vector.extract_strided_slice %63 {offsets = [0, 0], sizes = [2, 32], strides = [1, 1]} : vector<2x128xf32> to vector<2x32xf32>
    %65 = vector.extract_strided_slice %63 {offsets = [0, 32], sizes = [2, 32], strides = [1, 1]} : vector<2x128xf32> to vector<2x32xf32>
    %66 = vector.extract_strided_slice %63 {offsets = [0, 96], sizes = [2, 32], strides = [1, 1]} : vector<2x128xf32> to vector<2x32xf32>
    %67 = vector.extract_strided_slice %58 {offsets = [0, 64], sizes = [2, 32], strides = [1, 1]} : vector<2x128xf32> to vector<2x32xf32>
    %68 = math.tanh %67 : vector<2x32xf32>
    %69 = arith.mulf %65, %47 : vector<2x32xf32>
    %70 = arith.mulf %64, %68 : vector<2x32xf32>
    %71 = arith.addf %69, %70 : vector<2x32xf32>
    %72 = math.tanh %71 : vector<2x32xf32>
    %73 = arith.mulf %66, %72 : vector<2x32xf32>
    %74 = arith.index_cast %c2_i32 : i32 to index
    %c0_22 = arith.constant 0 : index
    %c0_23 = arith.constant 0 : index
    %75 = vector.load %arg5[%74, %c0_22, %c0_23] : memref<8x2x32xf32, #tpu.memory_space<vmem>>, vector<1x2x32xf32>
    %76 = vector.shape_cast %75 : vector<1x2x32xf32> to vector<2x32xf32>
    %77 = vector.shape_cast %73 : vector<2x32xf32> to vector<1x2x32xf32>
    tpu.vector_store %arg5[%74, %c0_22, %c0_23], %77 {strides = array<i32>} : memref<8x2x32xf32, #tpu.memory_space<vmem>>, vector<1x2x32xf32>,
    %c3_i32 = arith.constant 3 : i32
    %78 = arith.index_cast %c3_i32 : i32 to index
    %c0_24 = arith.constant 0 : index
    %c0_25 = arith.constant 0 : index
    %79 = vector.load %arg1[%78, %c0_24, %c0_25] : memref<8x2x128xf32, #tpu.memory_space<vmem>>, vector<1x2x128xf32>
    %80 = vector.shape_cast %79 : vector<1x2x128xf32> to vector<2x128xf32>
    %cst_26 = arith.constant dense<0.000000e+00> : vector<2x128xf32>
    %81 = tpu.matmul %73, %3, %cst_26 {dimension_numbers = #tpu.dot_dimension_numbers<[1], [0], [0], [1], [0, 0, 1, 1], [], []>} : vector<2x32xf32>, vector<32x128xf32>, vector<2x128xf32> -> vector<2x128xf32>
    %82 = arith.addf %80, %81 : vector<2x128xf32>
    %83 = arith.negf %82 : vector<2x128xf32>
    %84 = math.exp %83 : vector<2x128xf32>
    %cst_27 = arith.constant 1.000000e+00 : f32
    %85 = vector.broadcast %cst_27 : f32 to vector<2x128xf32>
    %86 = arith.addf %85, %84 : vector<2x128xf32>
    %87 = arith.divf %85, %86 : vector<2x128xf32>
    %88 = vector.extract_strided_slice %87 {offsets = [0, 0], sizes = [2, 32], strides = [1, 1]} : vector<2x128xf32> to vector<2x32xf32>
    %89 = vector.extract_strided_slice %87 {offsets = [0, 32], sizes = [2, 32], strides = [1, 1]} : vector<2x128xf32> to vector<2x32xf32>
    %90 = vector.extract_strided_slice %87 {offsets = [0, 96], sizes = [2, 32], strides = [1, 1]} : vector<2x128xf32> to vector<2x32xf32>
    %91 = vector.extract_strided_slice %82 {offsets = [0, 64], sizes = [2, 32], strides = [1, 1]} : vector<2x128xf32> to vector<2x32xf32>
    %92 = math.tanh %91 : vector<2x32xf32>
    %93 = arith.mulf %89, %71 : vector<2x32xf32>
    %94 = arith.mulf %88, %92 : vector<2x32xf32>
    %95 = arith.addf %93, %94 : vector<2x32xf32>
    %96 = math.tanh %95 : vector<2x32xf32>
    %97 = arith.mulf %90, %96 : vector<2x32xf32>
    %98 = arith.index_cast %c3_i32 : i32 to index
    %c0_28 = arith.constant 0 : index
    %c0_29 = arith.constant 0 : index
    %99 = vector.load %arg5[%98, %c0_28, %c0_29] : memref<8x2x32xf32, #tpu.memory_space<vmem>>, vector<1x2x32xf32>
    %100 = vector.shape_cast %99 : vector<1x2x32xf32> to vector<2x32xf32>
    %101 = vector.shape_cast %97 : vector<2x32xf32> to vector<1x2x32xf32>
    tpu.vector_store %arg5[%98, %c0_28, %c0_29], %101 {strides = array<i32>} : memref<8x2x32xf32, #tpu.memory_space<vmem>>, vector<1x2x32xf32>,
    %c4_i32 = arith.constant 4 : i32
    %102 = arith.index_cast %c4_i32 : i32 to index
    %c0_30 = arith.constant 0 : index
    %c0_31 = arith.constant 0 : index
    %103 = vector.load %arg1[%102, %c0_30, %c0_31] : memref<8x2x128xf32, #tpu.memory_space<vmem>>, vector<1x2x128xf32>
    %104 = vector.shape_cast %103 : vector<1x2x128xf32> to vector<2x128xf32>
    %cst_32 = arith.constant dense<0.000000e+00> : vector<2x128xf32>
    %105 = tpu.matmul %97, %3, %cst_32 {dimension_numbers = #tpu.dot_dimension_numbers<[1], [0], [0], [1], [0, 0, 1, 1], [], []>} : vector<2x32xf32>, vector<32x128xf32>, vector<2x128xf32> -> vector<2x128xf32>
    %106 = arith.addf %104, %105 : vector<2x128xf32>
    %107 = arith.negf %106 : vector<2x128xf32>
    %108 = math.exp %107 : vector<2x128xf32>
    %cst_33 = arith.constant 1.000000e+00 : f32
    %109 = vector.broadcast %cst_33 : f32 to vector<2x128xf32>
    %110 = arith.addf %109, %108 : vector<2x128xf32>
    %111 = arith.divf %109, %110 : vector<2x128xf32>
    %112 = vector.extract_strided_slice %111 {offsets = [0, 0], sizes = [2, 32], strides = [1, 1]} : vector<2x128xf32> to vector<2x32xf32>
    %113 = vector.extract_strided_slice %111 {offsets = [0, 32], sizes = [2, 32], strides = [1, 1]} : vector<2x128xf32> to vector<2x32xf32>
    %114 = vector.extract_strided_slice %111 {offsets = [0, 96], sizes = [2, 32], strides = [1, 1]} : vector<2x128xf32> to vector<2x32xf32>
    %115 = vector.extract_strided_slice %106 {offsets = [0, 64], sizes = [2, 32], strides = [1, 1]} : vector<2x128xf32> to vector<2x32xf32>
    %116 = math.tanh %115 : vector<2x32xf32>
    %117 = arith.mulf %113, %95 : vector<2x32xf32>
    %118 = arith.mulf %112, %116 : vector<2x32xf32>
    %119 = arith.addf %117, %118 : vector<2x32xf32>
    %120 = math.tanh %119 : vector<2x32xf32>
    %121 = arith.mulf %114, %120 : vector<2x32xf32>
    %122 = arith.index_cast %c4_i32 : i32 to index
    %c0_34 = arith.constant 0 : index
    %c0_35 = arith.constant 0 : index
    %123 = vector.load %arg5[%122, %c0_34, %c0_35] : memref<8x2x32xf32, #tpu.memory_space<vmem>>, vector<1x2x32xf32>
    %124 = vector.shape_cast %123 : vector<1x2x32xf32> to vector<2x32xf32>
    %125 = vector.shape_cast %121 : vector<2x32xf32> to vector<1x2x32xf32>
    tpu.vector_store %arg5[%122, %c0_34, %c0_35], %125 {strides = array<i32>} : memref<8x2x32xf32, #tpu.memory_space<vmem>>, vector<1x2x32xf32>,
    %c5_i32 = arith.constant 5 : i32
    %126 = arith.index_cast %c5_i32 : i32 to index
    %c0_36 = arith.constant 0 : index
    %c0_37 = arith.constant 0 : index
    %127 = vector.load %arg1[%126, %c0_36, %c0_37] : memref<8x2x128xf32, #tpu.memory_space<vmem>>, vector<1x2x128xf32>
    %128 = vector.shape_cast %127 : vector<1x2x128xf32> to vector<2x128xf32>
    %cst_38 = arith.constant dense<0.000000e+00> : vector<2x128xf32>
    %129 = tpu.matmul %121, %3, %cst_38 {dimension_numbers = #tpu.dot_dimension_numbers<[1], [0], [0], [1], [0, 0, 1, 1], [], []>} : vector<2x32xf32>, vector<32x128xf32>, vector<2x128xf32> -> vector<2x128xf32>
    %130 = arith.addf %128, %129 : vector<2x128xf32>
    %131 = arith.negf %130 : vector<2x128xf32>
    %132 = math.exp %131 : vector<2x128xf32>
    %cst_39 = arith.constant 1.000000e+00 : f32
    %133 = vector.broadcast %cst_39 : f32 to vector<2x128xf32>
    %134 = arith.addf %133, %132 : vector<2x128xf32>
    %135 = arith.divf %133, %134 : vector<2x128xf32>
    %136 = vector.extract_strided_slice %135 {offsets = [0, 0], sizes = [2, 32], strides = [1, 1]} : vector<2x128xf32> to vector<2x32xf32>
    %137 = vector.extract_strided_slice %135 {offsets = [0, 32], sizes = [2, 32], strides = [1, 1]} : vector<2x128xf32> to vector<2x32xf32>
    %138 = vector.extract_strided_slice %135 {offsets = [0, 96], sizes = [2, 32], strides = [1, 1]} : vector<2x128xf32> to vector<2x32xf32>
    %139 = vector.extract_strided_slice %130 {offsets = [0, 64], sizes = [2, 32], strides = [1, 1]} : vector<2x128xf32> to vector<2x32xf32>
    %140 = math.tanh %139 : vector<2x32xf32>
    %141 = arith.mulf %137, %119 : vector<2x32xf32>
    %142 = arith.mulf %136, %140 : vector<2x32xf32>
    %143 = arith.addf %141, %142 : vector<2x32xf32>
    %144 = math.tanh %143 : vector<2x32xf32>
    %145 = arith.mulf %138, %144 : vector<2x32xf32>
    %146 = arith.index_cast %c5_i32 : i32 to index
    %c0_40 = arith.constant 0 : index
    %c0_41 = arith.constant 0 : index
    %147 = vector.load %arg5[%146, %c0_40, %c0_41] : memref<8x2x32xf32, #tpu.memory_space<vmem>>, vector<1x2x32xf32>
    %148 = vector.shape_cast %147 : vector<1x2x32xf32> to vector<2x32xf32>
    %149 = vector.shape_cast %145 : vector<2x32xf32> to vector<1x2x32xf32>
    tpu.vector_store %arg5[%146, %c0_40, %c0_41], %149 {strides = array<i32>} : memref<8x2x32xf32, #tpu.memory_space<vmem>>, vector<1x2x32xf32>,
    %c6_i32 = arith.constant 6 : i32
    %150 = arith.index_cast %c6_i32 : i32 to index
    %c0_42 = arith.constant 0 : index
    %c0_43 = arith.constant 0 : index
    %151 = vector.load %arg1[%150, %c0_42, %c0_43] : memref<8x2x128xf32, #tpu.memory_space<vmem>>, vector<1x2x128xf32>
    %152 = vector.shape_cast %151 : vector<1x2x128xf32> to vector<2x128xf32>
    %cst_44 = arith.constant dense<0.000000e+00> : vector<2x128xf32>
    %153 = tpu.matmul %145, %3, %cst_44 {dimension_numbers = #tpu.dot_dimension_numbers<[1], [0], [0], [1], [0, 0, 1, 1], [], []>} : vector<2x32xf32>, vector<32x128xf32>, vector<2x128xf32> -> vector<2x128xf32>
    %154 = arith.addf %152, %153 : vector<2x128xf32>
    %155 = arith.negf %154 : vector<2x128xf32>
    %156 = math.exp %155 : vector<2x128xf32>
    %cst_45 = arith.constant 1.000000e+00 : f32
    %157 = vector.broadcast %cst_45 : f32 to vector<2x128xf32>
    %158 = arith.addf %157, %156 : vector<2x128xf32>
    %159 = arith.divf %157, %158 : vector<2x128xf32>
    %160 = vector.extract_strided_slice %159 {offsets = [0, 0], sizes = [2, 32], strides = [1, 1]} : vector<2x128xf32> to vector<2x32xf32>
    %161 = vector.extract_strided_slice %159 {offsets = [0, 32], sizes = [2, 32], strides = [1, 1]} : vector<2x128xf32> to vector<2x32xf32>
    %162 = vector.extract_strided_slice %159 {offsets = [0, 96], sizes = [2, 32], strides = [1, 1]} : vector<2x128xf32> to vector<2x32xf32>
    %163 = vector.extract_strided_slice %154 {offsets = [0, 64], sizes = [2, 32], strides = [1, 1]} : vector<2x128xf32> to vector<2x32xf32>
    %164 = math.tanh %163 : vector<2x32xf32>
    %165 = arith.mulf %161, %143 : vector<2x32xf32>
    %166 = arith.mulf %160, %164 : vector<2x32xf32>
    %167 = arith.addf %165, %166 : vector<2x32xf32>
    %168 = math.tanh %167 : vector<2x32xf32>
    %169 = arith.mulf %162, %168 : vector<2x32xf32>
    %170 = arith.index_cast %c6_i32 : i32 to index
    %c0_46 = arith.constant 0 : index
    %c0_47 = arith.constant 0 : index
    %171 = vector.load %arg5[%170, %c0_46, %c0_47] : memref<8x2x32xf32, #tpu.memory_space<vmem>>, vector<1x2x32xf32>
    %172 = vector.shape_cast %171 : vector<1x2x32xf32> to vector<2x32xf32>
    %173 = vector.shape_cast %169 : vector<2x32xf32> to vector<1x2x32xf32>
    tpu.vector_store %arg5[%170, %c0_46, %c0_47], %173 {strides = array<i32>} : memref<8x2x32xf32, #tpu.memory_space<vmem>>, vector<1x2x32xf32>,
    %c7_i32 = arith.constant 7 : i32
    %174 = arith.index_cast %c7_i32 : i32 to index
    %c0_48 = arith.constant 0 : index
    %c0_49 = arith.constant 0 : index
    %175 = vector.load %arg1[%174, %c0_48, %c0_49] : memref<8x2x128xf32, #tpu.memory_space<vmem>>, vector<1x2x128xf32>
    %176 = vector.shape_cast %175 : vector<1x2x128xf32> to vector<2x128xf32>
    %cst_50 = arith.constant dense<0.000000e+00> : vector<2x128xf32>
    %177 = tpu.matmul %169, %3, %cst_50 {dimension_numbers = #tpu.dot_dimension_numbers<[1], [0], [0], [1], [0, 0, 1, 1], [], []>} : vector<2x32xf32>, vector<32x128xf32>, vector<2x128xf32> -> vector<2x128xf32>
    %178 = arith.addf %176, %177 : vector<2x128xf32>
    %179 = arith.negf %178 : vector<2x128xf32>
    %180 = math.exp %179 : vector<2x128xf32>
    %cst_51 = arith.constant 1.000000e+00 : f32
    %181 = vector.broadcast %cst_51 : f32 to vector<2x128xf32>
    %182 = arith.addf %181, %180 : vector<2x128xf32>
    %183 = arith.divf %181, %182 : vector<2x128xf32>
    %184 = vector.extract_strided_slice %183 {offsets = [0, 0], sizes = [2, 32], strides = [1, 1]} : vector<2x128xf32> to vector<2x32xf32>
    %185 = vector.extract_strided_slice %183 {offsets = [0, 32], sizes = [2, 32], strides = [1, 1]} : vector<2x128xf32> to vector<2x32xf32>
    %186 = vector.extract_strided_slice %183 {offsets = [0, 96], sizes = [2, 32], strides = [1, 1]} : vector<2x128xf32> to vector<2x32xf32>
    %187 = vector.extract_strided_slice %178 {offsets = [0, 64], sizes = [2, 32], strides = [1, 1]} : vector<2x128xf32> to vector<2x32xf32>
    %188 = math.tanh %187 : vector<2x32xf32>
    %189 = arith.mulf %185, %167 : vector<2x32xf32>
    %190 = arith.mulf %184, %188 : vector<2x32xf32>
    %191 = arith.addf %189, %190 : vector<2x32xf32>
    %192 = math.tanh %191 : vector<2x32xf32>
    %193 = arith.mulf %186, %192 : vector<2x32xf32>
    %194 = arith.index_cast %c7_i32 : i32 to index
    %c0_52 = arith.constant 0 : index
    %c0_53 = arith.constant 0 : index
    %195 = vector.load %arg5[%194, %c0_52, %c0_53] : memref<8x2x32xf32, #tpu.memory_space<vmem>>, vector<1x2x32xf32>
    %196 = vector.shape_cast %195 : vector<1x2x32xf32> to vector<2x32xf32>
    %197 = vector.shape_cast %193 : vector<2x32xf32> to vector<1x2x32xf32>
    tpu.vector_store %arg5[%194, %c0_52, %c0_53], %197 {strides = array<i32>} : memref<8x2x32xf32, #tpu.memory_space<vmem>>, vector<1x2x32xf32>,
    %c8_i32 = arith.constant 8 : i32
    %c0_54 = arith.constant 0 : index
    %c0_55 = arith.constant 0 : index
    %198 = vector.load %arg7[%c0_54, %c0_55] : memref<2x32xf32, #tpu.memory_space<vmem>>, vector<2x32xf32>
    tpu.vector_store %arg7[%c0_54, %c0_55], %193 {strides = array<i32>} : memref<2x32xf32, #tpu.memory_space<vmem>>, vector<2x32xf32>,
    %c0_56 = arith.constant 0 : index
    %c0_57 = arith.constant 0 : index
    %199 = vector.load %arg8[%c0_56, %c0_57] : memref<2x32xf32, #tpu.memory_space<vmem>>, vector<2x32xf32>
    tpu.vector_store %arg8[%c0_56, %c0_57], %191 {strides = array<i32>} : memref<2x32xf32, #tpu.memory_space<vmem>>, vector<2x32xf32>,
    %c0_i32_58 = arith.constant 0 : i32
    %200 = arith.cmpi eq, %arg0, %c0_i32_58 : i32
    %201 = arith.extui %200 : i1 to i32
    %c0_i32_59 = arith.constant 0 : i32
    %202 = arith.cmpi ne, %201, %c0_i32_59 : i32
    scf.if %202 {
      %c0_60 = arith.constant 0 : index
      %c0_61 = arith.constant 0 : index
      %203 = vector.load %arg6[%c0_60, %c0_61] : memref<2x32xf32, #tpu.memory_space<vmem>>, vector<2x32xf32>
      tpu.vector_store %arg6[%c0_60, %c0_61], %191 {strides = array<i32>} : memref<2x32xf32, #tpu.memory_space<vmem>>, vector<2x32xf32>,
    } else {
    }
    return
  }
  func.func @transform_0(%arg0: i32) -> (i32, i32, i32) {
    %c0_i32 = arith.constant 0 : i32
    %c0_i32_0 = arith.constant 0 : i32
    %c0_i32_1 = arith.constant 0 : i32
    return %arg0, %c0_i32, %c0_i32_0 : i32, i32, i32
  }
  func.func @transform_1(%arg0: i32) -> (i32, i32) {
    %c0_i32 = arith.constant 0 : i32
    %c0_i32_0 = arith.constant 0 : i32
    %c0_i32_1 = arith.constant 0 : i32
    return %c0_i32, %c0_i32_0 : i32, i32
  }
  func.func @transform_2(%arg0: i32) -> (i32, i32) {
    %c0_i32 = arith.constant 0 : i32
    %c0_i32_0 = arith.constant 0 : i32
    %c0_i32_1 = arith.constant 0 : i32
    return %c0_i32, %c0_i32_0 : i32, i32
  }
  func.func @transform_3(%arg0: i32) -> (i32, i32) {
    %c0_i32 = arith.constant 0 : i32
    %c0_i32_0 = arith.constant 0 : i32
    %c0_i32_1 = arith.constant 0 : i32
    return %c0_i32, %c0_i32_0 : i32, i32
  }
  func.func @transform_4(%arg0: i32) -> (i32, i32, i32) {
    %c0_i32 = arith.constant 0 : i32
    %c0_i32_0 = arith.constant 0 : i32
    %c0_i32_1 = arith.constant 0 : i32
    return %arg0, %c0_i32, %c0_i32_0 : i32, i32, i32
  }
  func.func @transform_5(%arg0: i32) -> (i32, i32) {
    %c0_i32 = arith.constant 0 : i32
    %c0_i32_0 = arith.constant 0 : i32
    %c0_i32_1 = arith.constant 0 : i32
    return %c0_i32, %c0_i32_0 : i32, i32
  }
}

</mosaic_0001>

<llo_original>
// kernel: encoder_forward.1
$region0: #{encoder_forward.1}
  #allocation0 [shape = 'u32[]', space=smem, size = 0x4, offset = 0x4, fixed_abs, tag = 'smem constant byte address 0x4 - core index']
  #allocation1 [shape = 'u32[72,128]{1,0:T(1,128)}', space=vmem, size = 0x9000, scoped, tag = 'internal scratch']
  #allocation2 [shape = 'f32[2,32]{1,0:T(2,128)}', space=vmem, size = 0x400, scoped, tag = 'scratch operand']
  #allocation3 [shape = 'f32[2,32]{1,0:T(2,128)}', space=vmem, size = 0x400, scoped, tag = 'scratch operand']
  %s0 = inlined_call_operand.vmem [shape: f32[8,2,128], index: 0, kind: input, shape index: {}]
  %s1 = inlined_call_operand.vmem [shape: f32[32,128], index: 1, kind: input, shape index: {}]
  %s2 = inlined_call_operand.vmem [shape: f32[2,32], index: 2, kind: input, shape index: {}]
  %s3 = inlined_call_operand.vmem [shape: f32[2,32], index: 3, kind: input, shape index: {}]
  %s4 = inlined_call_operand.vmem [shape: f32[8,2,32], index: 4, kind: output, shape index: {0}]
  %s5 = inlined_call_operand.hbm [shape: f32[2,32], index: 5, kind: output, shape index: {1}]
  %6 = xla_tuple %s4, %s5
  %s7 = sld [smem:[#allocation0]]
  $region42: #{encoder_forward.1} parent=0
    _
  %s9 = ssub.s32 1, %s7
  %s10 = scalar_select 0, %s9, %s7
  $region1: #{encoder_forward.1} parent=0
    #allocation4 [shape = 'u8[1024]{0}', space=vmem, size = 0x400, scoped, tag = 'output window, operand 1, single buffered']
    #allocation5 [shape = 's32[1]{0}', space=sflag, size = 0x4, scoped, tag = 'scoped memory for encoder_forward.1']
    %11 = vsyncpa [#allocation5], 0
    // Predicated region
    $region2: #{encoder_forward.1} parent=1 // pred_check
      _
    $region3: #{encoder_forward.1} parent=1 // pred_check_branch
      %13 = sbr.rel (0) target = $region5
    $region4: #{encoder_forward.1} parent=1 // pred_region
      _
    $region5: #{encoder_forward.1} parent=1 // pred_fallthru
      _
    // Predicated region
    $region6: #{encoder_forward.1} parent=1 // pred_check
      _
    $region7: #{encoder_forward.1} parent=1 // pred_check_branch
      %15 = sbr.rel (0) target = $region9
    $region8: #{encoder_forward.1} parent=1 // pred_region
      _
    $region9: #{encoder_forward.1} parent=1 // pred_fallthru
      _
    // Predicated region
    $region10: #{encoder_forward.1} parent=1 // pred_check
      _
    $region11: #{encoder_forward.1} parent=1 // pred_check_branch
      %17 = sbr.rel (0) target = $region13
    $region12: #{encoder_forward.1} parent=1 // pred_region
      _
    $region13: #{encoder_forward.1} parent=1 // pred_fallthru
      _
    // Predicated region
    $region14: #{encoder_forward.1} parent=1 // pred_check
      _
    $region15: #{encoder_forward.1} parent=1 // pred_check_branch
      %19 = sbr.rel (0) target = $region17
    $region16: #{encoder_forward.1} parent=1 // pred_region
      _
    $region17: #{encoder_forward.1} parent=1 // pred_fallthru
      _
    %p20 = scmp.eq.s32.totalorder 0, 0
    // Predicated region
    $region18: #{encoder_forward.1} parent=1 // pred_check
      %p21 = pneg %p20
    $region19: #{encoder_forward.1} parent=1 // pred_check_branch
      %23 = sbr.rel (%p21) target = $region21
    $region20: #{encoder_forward.1} parent=1 // pred_region
      %v24 = vld [vmem:[%s2] sm:$0x3]
      %vm25 = vcmask 254976
      %26 = vst.msk [vmem:[#allocation2] sm:$0x3] %vm25, %v24
      %v27 = vld [vmem:[%s3] sm:$0x3]
      %28 = vst.msk [vmem:[#allocation3] sm:$0x3] %vm25, %v27
    $region21: #{encoder_forward.1} parent=1 // pred_fallthru
      _
    %v29 = vld [vmem:[%s1] sm:$0xff]
    %v30 = vld [vmem:[%s1 + $0x8] sm:$0xff]
    %v31 = vld [vmem:[%s1 + $0x10] sm:$0xff]
    %v32 = vld [vmem:[%s1 + $0x18] sm:$0xff]
    %v33 = vld [vmem:[#allocation2] sm:$0x3]
    %v34 = vld [vmem:[#allocation3] sm:$0x3]
    %v35 = vld [vmem:[%s0] sm:$0x3]
    %vm36 = vcmask 261120
    %v38 = vsel %vm36, %v33, 0
    %40 = vmatpush.msra.mxu0 0.0
    %41 = vmatpush.msra.mxu0 0.0
    %42 = vmatpush.msra.mxu0 0.0
    %43 = vmatpush.msra.mxu0 0.0
    %44 = vmatpush.msra.mxu0 0.0
    %45 = vmatpush.msra.mxu0 0.0
    %46 = vmatpush.msra.mxu0 0.0
    %47 = vmatpush.msra.mxu0 0.0
    %48 = vmatpush.msra.mxu0 0.0
    %49 = vmatpush.msra.mxu0 0.0
    %50 = vmatpush.msra.mxu0 0.0
    %51 = vmatpush.msra.mxu0 0.0
    %52 = vmatpush.msra.mxu0 %v32
    %53 = vmatpush.msra.mxu0 %v31
    %54 = vmatpush.msra.mxu0 %v30
    %55 = vmatpush.msra.mxu0 %v29
    %56 = vmatmul.f32.gmra.mxu0 %v38
    %v57 = vpop.f32.mrf.mxu0
    %v58 = vadd.f32 0.0, %v57
    %59 = vdwg.mxu0
    %v60 = vadd.f32 %v35, %v58
    %v61 = vxor.u32 %v60, 2147483648
    %v62 = vmul.f32 %v61, 1.442695
    %v63 = vpow.pop %v62
    %v64 = vadd.f32 %v63, 1.0
    %v65 = vrcp.pop %v64
    %v66 = vmul.f32 %v64, %v65
    %v67 = vsub.f32 1.0, %v66
    %v68 = vmul.f32 %v65, %v67
    %v69 = vadd.f32 %v65, %v68
    %vm70 = vweird.f32 %v64
    %vm71 = vweird.f32 %v65
    %vm72 = vmor %vm70, %vm71
    %v73 = vsel %vm72, %v65, %v69
    %v74 = vand.u32 2147483647, %v64
    %vm75 = vcmp.eq.f32.partialorder %v74, 8.507059e+37
    %v76 = vand.u32 %v64, 2147483648
    %v77 = vor.u32 1.1754944e-38, %v76
    %v78 = vsel %vm75, %v77, %v73
    %v79 = vmul.f32 1.0, %v78
    %v80 = vtanh.pop %v60
    %82 = vrot.lane.b32.xlu0 %v34, 32
    %v83 = vpop.permute.xlu0 %82
    %v85 = vmul.f32 %v79, %v83
    %87 = vrot.lane.b32.xlu0 %v80, 64
    %v88 = vpop.permute.xlu0 %87
    %v90 = vmul.f32 %v79, %v88
    %92 = vrot.lane.b32.xlu0 %v90, 32
    %v93 = vpop.permute.xlu0 %92
    %v95 = vadd.f32 %v85, %v93
    %v96 = vtanh.pop %v95
    %98 = vrot.lane.b32.xlu0 %v96, 64
    %v99 = vpop.permute.xlu0 %98
    %v101 = vmul.f32 %v79, %v99
    %103 = vrot.lane.b32.xlu0 %v101, 32
    %v104 = vpop.permute.xlu0 %103
    %vm106 = vcmask 254976
    %107 = vst.msk [vmem:[%s4] sm:$0x3] %vm106, %v104
    %s108 = scalar_lea.vmem %s0, 2
    %v109 = vld [vmem:[%s108] sm:$0x3]
    %v110 = vsel %vm36, %v104, 0
    %112 = vmatpush.msra.mxu0 0.0
    %113 = vmatpush.msra.mxu0 0.0
    %114 = vmatpush.msra.mxu0 0.0
    %115 = vmatpush.msra.mxu0 0.0
    %116 = vmatpush.msra.mxu0 0.0
    %117 = vmatpush.msra.mxu0 0.0
    %118 = vmatpush.msra.mxu0 0.0
    %119 = vmatpush.msra.mxu0 0.0
    %120 = vmatpush.msra.mxu0 0.0
    %121 = vmatpush.msra.mxu0 0.0
    %122 = vmatpush.msra.mxu0 0.0
    %123 = vmatpush.msra.mxu0 0.0
    %124 = vmatpush.msra.mxu0 %v32
    %125 = vmatpush.msra.mxu0 %v31
    %126 = vmatpush.msra.mxu0 %v30
    %127 = vmatpush.msra.mxu0 %v29
    %128 = vmatmul.f32.gmra.mxu0 %v110
    %v129 = vpop.f32.mrf.mxu0
    %v130 = vadd.f32 0.0, %v129
    %131 = vdwg.mxu0
    %v132 = vadd.f32 %v109, %v130
    %v133 = vxor.u32 %v132, 2147483648
    %v134 = vmul.f32 %v133, 1.442695
    %v135 = vpow.pop %v134
    %v136 = vadd.f32 %v135, 1.0
    %v137 = vrcp.pop %v136
    %v138 = vmul.f32 %v136, %v137
    %v139 = vsub.f32 1.0, %v138
    %v140 = vmul.f32 %v137, %v139
    %v141 = vadd.f32 %v137, %v140
    %vm142 = vweird.f32 %v136
    %vm143 = vweird.f32 %v137
    %vm144 = vmor %vm142, %vm143
    %v145 = vsel %vm144, %v137, %v141
    %v146 = vand.u32 2147483647, %v136
    %vm147 = vcmp.eq.f32.partialorder %v146, 8.507059e+37
    %v148 = vand.u32 %v136, 2147483648
    %v149 = vor.u32 1.1754944e-38, %v148
    %v150 = vsel %vm147, %v149, %v145
    %v151 = vmul.f32 1.0, %v150
    %v152 = vtanh.pop %v132
    %v153 = vmul.f32 %v151, %v95
    %155 = vrot.lane.b32.xlu0 %v152, 64
    %v156 = vpop.permute.xlu0 %155
    %v158 = vmul.f32 %v151, %v156
    %160 = vrot.lane.b32.xlu0 %v158, 32
    %v161 = vpop.permute.xlu0 %160
    %v163 = vadd.f32 %v153, %v161
    %v164 = vtanh.pop %v163
    %166 = vrot.lane.b32.xlu0 %v164, 64
    %v167 = vpop.permute.xlu0 %166
    %v169 = vmul.f32 %v151, %v167
    %171 = vrot.lane.b32.xlu0 %v169, 32
    %v172 = vpop.permute.xlu0 %171
    %s174 = scalar_lea.vmem %s4, 2
    %175 = vst.msk [vmem:[%s174] sm:$0x3] %vm106, %v172
    %s176 = scalar_lea.vmem %s0, 4
    %v177 = vld [vmem:[%s176] sm:$0x3]
    %v178 = vsel %vm36, %v172, 0
    %180 = vmatpush.msra.mxu0 0.0
    %181 = vmatpush.msra.mxu0 0.0
    %182 = vmatpush.msra.mxu0 0.0
    %183 = vmatpush.msra.mxu0 0.0
    %184 = vmatpush.msra.mxu0 0.0
    %185 = vmatpush.msra.mxu0 0.0
    %186 = vmatpush.msra.mxu0 0.0
    %187 = vmatpush.msra.mxu0 0.0
    %188 = vmatpush.msra.mxu0 0.0
    %189 = vmatpush.msra.mxu0 0.0
    %190 = vmatpush.msra.mxu0 0.0
    %191 = vmatpush.msra.mxu0 0.0
    %192 = vmatpush.msra.mxu0 %v32
    %193 = vmatpush.msra.mxu0 %v31
    %194 = vmatpush.msra.mxu0 %v30
    %195 = vmatpush.msra.mxu0 %v29
    %196 = vmatmul.f32.gmra.mxu0 %v178
    %v197 = vpop.f32.mrf.mxu0
    %v198 = vadd.f32 0.0, %v197
    %199 = vdwg.mxu0
    %v200 = vadd.f32 %v177, %v198
    %v201 = vxor.u32 %v200, 2147483648
    %v202 = vmul.f32 %v201, 1.442695
    %v203 = vpow.pop %v202
    %v204 = vadd.f32 %v203, 1.0
    %v205 = vrcp.pop %v204
    %v206 = vmul.f32 %v204, %v205
    %v207 = vsub.f32 1.0, %v206
    %v208 = vmul.f32 %v205, %v207
    %v209 = vadd.f32 %v205, %v208
    %vm210 = vweird.f32 %v204
    %vm211 = vweird.f32 %v205
    %vm212 = vmor %vm210, %vm211
    %v213 = vsel %vm212, %v205, %v209
    %v214 = vand.u32 2147483647, %v204
    %vm215 = vcmp.eq.f32.partialorder %v214, 8.507059e+37
    %v216 = vand.u32 %v204, 2147483648
    %v217 = vor.u32 1.1754944e-38, %v216
    %v218 = vsel %vm215, %v217, %v213
    %v219 = vmul.f32 1.0, %v218
    %v220 = vtanh.pop %v200
    %v221 = vmul.f32 %v219, %v163
    %223 = vrot.lane.b32.xlu0 %v220, 64
    %v224 = vpop.permute.xlu0 %223
    %v226 = vmul.f32 %v219, %v224
    %228 = vrot.lane.b32.xlu0 %v226, 32
    %v229 = vpop.permute.xlu0 %228
    %v231 = vadd.f32 %v221, %v229
    %v232 = vtanh.pop %v231
    %234 = vrot.lane.b32.xlu0 %v232, 64
    %v235 = vpop.permute.xlu0 %234
    %v237 = vmul.f32 %v219, %v235
    %239 = vrot.lane.b32.xlu0 %v237, 32
    %v240 = vpop.permute.xlu0 %239
    %s242 = scalar_lea.vmem %s4, 4
    %243 = vst.msk [vmem:[%s242] sm:$0x3] %vm106, %v240
    %s244 = scalar_lea.vmem %s0, 6
    %v245 = vld [vmem:[%s244] sm:$0x3]
    %v246 = vsel %vm36, %v240, 0
    %248 = vmatpush.msra.mxu0 0.0
    %249 = vmatpush.msra.mxu0 0.0
    %250 = vmatpush.msra.mxu0 0.0
    %251 = vmatpush.msra.mxu0 0.0
    %252 = vmatpush.msra.mxu0 0.0
    %253 = vmatpush.msra.mxu0 0.0
    %254 = vmatpush.msra.mxu0 0.0
    %255 = vmatpush.msra.mxu0 0.0
    %256 = vmatpush.msra.mxu0 0.0
    %257 = vmatpush.msra.mxu0 0.0
    %258 = vmatpush.msra.mxu0 0.0
    %259 = vmatpush.msra.mxu0 0.0
    %260 = vmatpush.msra.mxu0 %v32
    %261 = vmatpush.msra.mxu0 %v31
    %262 = vmatpush.msra.mxu0 %v30
    %263 = vmatpush.msra.mxu0 %v29
    %264 = vmatmul.f32.gmra.mxu0 %v246
    %v265 = vpop.f32.mrf.mxu0
    %v266 = vadd.f32 0.0, %v265
    %267 = vdwg.mxu0
    %v268 = vadd.f32 %v245, %v266
    %v269 = vxor.u32 %v268, 2147483648
    %v270 = vmul.f32 %v269, 1.442695
    %v271 = vpow.pop %v270
    %v272 = vadd.f32 %v271, 1.0
    %v273 = vrcp.pop %v272
    %v274 = vmul.f32 %v272, %v273
    %v275 = vsub.f32 1.0, %v274
    %v276 = vmul.f32 %v273, %v275
    %v277 = vadd.f32 %v273, %v276
    %vm278 = vweird.f32 %v272
    %vm279 = vweird.f32 %v273
    %vm280 = vmor %vm278, %vm279
    %v281 = vsel %vm280, %v273, %v277
    %v282 = vand.u32 2147483647, %v272
    %vm283 = vcmp.eq.f32.partialorder %v282, 8.507059e+37
    %v284 = vand.u32 %v272, 2147483648
    %v285 = vor.u32 1.1754944e-38, %v284
    %v286 = vsel %vm283, %v285, %v281
    %v287 = vmul.f32 1.0, %v286
    %v288 = vtanh.pop %v268
    %v289 = vmul.f32 %v287, %v231
    %291 = vrot.lane.b32.xlu0 %v288, 64
    %v292 = vpop.permute.xlu0 %291
    %v294 = vmul.f32 %v287, %v292
    %296 = vrot.lane.b32.xlu0 %v294, 32
    %v297 = vpop.permute.xlu0 %296
    %v299 = vadd.f32 %v289, %v297
    %v300 = vtanh.pop %v299
    %302 = vrot.lane.b32.xlu0 %v300, 64
    %v303 = vpop.permute.xlu0 %302
    %v305 = vmul.f32 %v287, %v303
    %307 = vrot.lane.b32.xlu0 %v305, 32
    %v308 = vpop.permute.xlu0 %307
    %s310 = scalar_lea.vmem %s4, 6
    %311 = vst.msk [vmem:[%s310] sm:$0x3] %vm106, %v308
    %s312 = scalar_lea.vmem %s0, 8
    %v313 = vld [vmem:[%s312] sm:$0x3]
    %v314 = vsel %vm36, %v308, 0
    %316 = vmatpush.msra.mxu0 0.0
    %317 = vmatpush.msra.mxu0 0.0
    %318 = vmatpush.msra.mxu0 0.0
    %319 = vmatpush.msra.mxu0 0.0
    %320 = vmatpush.msra.mxu0 0.0
    %321 = vmatpush.msra.mxu0 0.0
    %322 = vmatpush.msra.mxu0 0.0
    %323 = vmatpush.msra.mxu0 0.0
    %324 = vmatpush.msra.mxu0 0.0
    %325 = vmatpush.msra.mxu0 0.0
    %326 = vmatpush.msra.mxu0 0.0
    %327 = vmatpush.msra.mxu0 0.0
    %328 = vmatpush.msra.mxu0 %v32
    %329 = vmatpush.msra.mxu0 %v31
    %330 = vmatpush.msra.mxu0 %v30
    %331 = vmatpush.msra.mxu0 %v29
    %332 = vmatmul.f32.gmra.mxu0 %v314
    %v333 = vpop.f32.mrf.mxu0
    %v334 = vadd.f32 0.0, %v333
    %335 = vdwg.mxu0
    %v336 = vadd.f32 %v313, %v334
    %v337 = vxor.u32 %v336, 2147483648
    %v338 = vmul.f32 %v337, 1.442695
    %v339 = vpow.pop %v338
    %v340 = vadd.f32 %v339, 1.0
    %v341 = vrcp.pop %v340
    %v342 = vmul.f32 %v340, %v341
    %v343 = vsub.f32 1.0, %v342
    %v344 = vmul.f32 %v341, %v343
    %v345 = vadd.f32 %v341, %v344
    %vm346 = vweird.f32 %v340
    %vm347 = vweird.f32 %v341
    %vm348 = vmor %vm346, %vm347
    %v349 = vsel %vm348, %v341, %v345
    %v350 = vand.u32 2147483647, %v340
    %vm351 = vcmp.eq.f32.partialorder %v350, 8.507059e+37
    %v352 = vand.u32 %v340, 2147483648
    %v353 = vor.u32 1.1754944e-38, %v352
    %v354 = vsel %vm351, %v353, %v349
    %v355 = vmul.f32 1.0, %v354
    %v356 = vtanh.pop %v336
    %v357 = vmul.f32 %v355, %v299
    %359 = vrot.lane.b32.xlu0 %v356, 64
    %v360 = vpop.permute.xlu0 %359
    %v362 = vmul.f32 %v355, %v360
    %364 = vrot.lane.b32.xlu0 %v362, 32
    %v365 = vpop.permute.xlu0 %364
    %v367 = vadd.f32 %v357, %v365
    %v368 = vtanh.pop %v367
    %370 = vrot.lane.b32.xlu0 %v368, 64
    %v371 = vpop.permute.xlu0 %370
    %v373 = vmul.f32 %v355, %v371
    %375 = vrot.lane.b32.xlu0 %v373, 32
    %v376 = vpop.permute.xlu0 %375
    %s378 = scalar_lea.vmem %s4, 8
    %379 = vst.msk [vmem:[%s378] sm:$0x3] %vm106, %v376
    %s380 = scalar_lea.vmem %s0, 10
    %v381 = vld [vmem:[%s380] sm:$0x3]
    %v382 = vsel %vm36, %v376, 0
    %384 = vmatpush.msra.mxu0 0.0
    %385 = vmatpush.msra.mxu0 0.0
    %386 = vmatpush.msra.mxu0 0.0
    %387 = vmatpush.msra.mxu0 0.0
    %388 = vmatpush.msra.mxu0 0.0
    %389 = vmatpush.msra.mxu0 0.0
    %390 = vmatpush.msra.mxu0 0.0
    %391 = vmatpush.msra.mxu0 0.0
    %392 = vmatpush.msra.mxu0 0.0
    %393 = vmatpush.msra.mxu0 0.0
    %394 = vmatpush.msra.mxu0 0.0
    %395 = vmatpush.msra.mxu0 0.0
    %396 = vmatpush.msra.mxu0 %v32
    %397 = vmatpush.msra.mxu0 %v31
    %398 = vmatpush.msra.mxu0 %v30
    %399 = vmatpush.msra.mxu0 %v29
    %400 = vmatmul.f32.gmra.mxu0 %v382
    %v401 = vpop.f32.mrf.mxu0
    %v402 = vadd.f32 0.0, %v401
    %403 = vdwg.mxu0
    %v404 = vadd.f32 %v381, %v402
    %v405 = vxor.u32 %v404, 2147483648
    %v406 = vmul.f32 %v405, 1.442695
    %v407 = vpow.pop %v406
    %v408 = vadd.f32 %v407, 1.0
    %v409 = vrcp.pop %v408
    %v410 = vmul.f32 %v408, %v409
    %v411 = vsub.f32 1.0, %v410
    %v412 = vmul.f32 %v409, %v411
    %v413 = vadd.f32 %v409, %v412
    %vm414 = vweird.f32 %v408
    %vm415 = vweird.f32 %v409
    %vm416 = vmor %vm414, %vm415
    %v417 = vsel %vm416, %v409, %v413
    %v418 = vand.u32 2147483647, %v408
    %vm419 = vcmp.eq.f32.partialorder %v418, 8.507059e+37
    %v420 = vand.u32 %v408, 2147483648
    %v421 = vor.u32 1.1754944e-38, %v420
    %v422 = vsel %vm419, %v421, %v417
    %v423 = vmul.f32 1.0, %v422
    %v424 = vtanh.pop %v404
    %v425 = vmul.f32 %v423, %v367
    %427 = vrot.lane.b32.xlu0 %v424, 64
    %v428 = vpop.permute.xlu0 %427
    %v430 = vmul.f32 %v423, %v428
    %432 = vrot.lane.b32.xlu0 %v430, 32
    %v433 = vpop.permute.xlu0 %432
    %v435 = vadd.f32 %v425, %v433
    %v436 = vtanh.pop %v435
    %438 = vrot.lane.b32.xlu0 %v436, 64
    %v439 = vpop.permute.xlu0 %438
    %v441 = vmul.f32 %v423, %v439
    %443 = vrot.lane.b32.xlu0 %v441, 32
    %v444 = vpop.permute.xlu0 %443
    %s446 = scalar_lea.vmem %s4, 10
    %447 = vst.msk [vmem:[%s446] sm:$0x3] %vm106, %v444
    %s448 = scalar_lea.vmem %s0, 12
    %v449 = vld [vmem:[%s448] sm:$0x3]
    %v450 = vsel %vm36, %v444, 0
    %452 = vmatpush.msra.mxu0 0.0
    %453 = vmatpush.msra.mxu0 0.0
    %454 = vmatpush.msra.mxu0 0.0
    %455 = vmatpush.msra.mxu0 0.0
    %456 = vmatpush.msra.mxu0 0.0
    %457 = vmatpush.msra.mxu0 0.0
    %458 = vmatpush.msra.mxu0 0.0
    %459 = vmatpush.msra.mxu0 0.0
    %460 = vmatpush.msra.mxu0 0.0
    %461 = vmatpush.msra.mxu0 0.0
    %462 = vmatpush.msra.mxu0 0.0
    %463 = vmatpush.msra.mxu0 0.0
    %464 = vmatpush.msra.mxu0 %v32
    %465 = vmatpush.msra.mxu0 %v31
    %466 = vmatpush.msra.mxu0 %v30
    %467 = vmatpush.msra.mxu0 %v29
    %468 = vmatmul.f32.gmra.mxu0 %v450
    %v469 = vpop.f32.mrf.mxu0
    %v470 = vadd.f32 0.0, %v469
    %471 = vdwg.mxu0
    %v472 = vadd.f32 %v449, %v470
    %v473 = vxor.u32 %v472, 2147483648
    %v474 = vmul.f32 %v473, 1.442695
    %v475 = vpow.pop %v474
    %v476 = vadd.f32 %v475, 1.0
    %v477 = vrcp.pop %v476
    %v478 = vmul.f32 %v476, %v477
    %v479 = vsub.f32 1.0, %v478
    %v480 = vmul.f32 %v477, %v479
    %v481 = vadd.f32 %v477, %v480
    %vm482 = vweird.f32 %v476
    %vm483 = vweird.f32 %v477
    %vm484 = vmor %vm482, %vm483
    %v485 = vsel %vm484, %v477, %v481
    %v486 = vand.u32 2147483647, %v476
    %vm487 = vcmp.eq.f32.partialorder %v486, 8.507059e+37
    %v488 = vand.u32 %v476, 2147483648
    %v489 = vor.u32 1.1754944e-38, %v488
    %v490 = vsel %vm487, %v489, %v485
    %v491 = vmul.f32 1.0, %v490
    %v492 = vtanh.pop %v472
    %v493 = vmul.f32 %v491, %v435
    %495 = vrot.lane.b32.xlu0 %v492, 64
    %v496 = vpop.permute.xlu0 %495
    %v498 = vmul.f32 %v491, %v496
    %500 = vrot.lane.b32.xlu0 %v498, 32
    %v501 = vpop.permute.xlu0 %500
    %v503 = vadd.f32 %v493, %v501
    %v504 = vtanh.pop %v503
    %506 = vrot.lane.b32.xlu0 %v504, 64
    %v507 = vpop.permute.xlu0 %506
    %v509 = vmul.f32 %v491, %v507
    %511 = vrot.lane.b32.xlu0 %v509, 32
    %v512 = vpop.permute.xlu0 %511
    %s514 = scalar_lea.vmem %s4, 12
    %515 = vst.msk [vmem:[%s514] sm:$0x3] %vm106, %v512
    %s516 = scalar_lea.vmem %s0, 14
    %v517 = vld [vmem:[%s516] sm:$0x3]
    %v518 = vsel %vm36, %v512, 0
    %520 = vmatpush.msra.mxu0 0.0
    %521 = vmatpush.msra.mxu0 0.0
    %522 = vmatpush.msra.mxu0 0.0
    %523 = vmatpush.msra.mxu0 0.0
    %524 = vmatpush.msra.mxu0 0.0
    %525 = vmatpush.msra.mxu0 0.0
    %526 = vmatpush.msra.mxu0 0.0
    %527 = vmatpush.msra.mxu0 0.0
    %528 = vmatpush.msra.mxu0 0.0
    %529 = vmatpush.msra.mxu0 0.0
    %530 = vmatpush.msra.mxu0 0.0
    %531 = vmatpush.msra.mxu0 0.0
    %532 = vmatpush.msra.mxu0 %v32
    %533 = vmatpush.msra.mxu0 %v31
    %534 = vmatpush.msra.mxu0 %v30
    %535 = vmatpush.msra.mxu0 %v29
    %536 = vmatmul.f32.gmra.mxu0 %v518
    %v537 = vpop.f32.mrf.mxu0
    %v538 = vadd.f32 0.0, %v537
    %539 = vdwg.mxu0
    %v540 = vadd.f32 %v517, %v538
    %v541 = vxor.u32 %v540, 2147483648
    %v542 = vmul.f32 %v541, 1.442695
    %v543 = vpow.pop %v542
    %v544 = vadd.f32 %v543, 1.0
    %v545 = vrcp.pop %v544
    %v546 = vmul.f32 %v544, %v545
    %v547 = vsub.f32 1.0, %v546
    %v548 = vmul.f32 %v545, %v547
    %v549 = vadd.f32 %v545, %v548
    %vm550 = vweird.f32 %v544
    %vm551 = vweird.f32 %v545
    %vm552 = vmor %vm550, %vm551
    %v553 = vsel %vm552, %v545, %v549
    %v554 = vand.u32 2147483647, %v544
    %vm555 = vcmp.eq.f32.partialorder %v554, 8.507059e+37
    %v556 = vand.u32 %v544, 2147483648
    %v557 = vor.u32 1.1754944e-38, %v556
    %v558 = vsel %vm555, %v557, %v553
    %v559 = vmul.f32 1.0, %v558
    %v560 = vtanh.pop %v540
    %v561 = vmul.f32 %v559, %v503
    %563 = vrot.lane.b32.xlu0 %v560, 64
    %v564 = vpop.permute.xlu0 %563
    %v566 = vmul.f32 %v559, %v564
    %568 = vrot.lane.b32.xlu0 %v566, 32
    %v569 = vpop.permute.xlu0 %568
    %v571 = vadd.f32 %v561, %v569
    %v572 = vtanh.pop %v571
    %574 = vrot.lane.b32.xlu0 %v572, 64
    %v575 = vpop.permute.xlu0 %574
    %v577 = vmul.f32 %v559, %v575
    %579 = vrot.lane.b32.xlu0 %v577, 32
    %v580 = vpop.permute.xlu0 %579
    %s582 = scalar_lea.vmem %s4, 14
    %583 = vst.msk [vmem:[%s582] sm:$0x3] %vm106, %v580
    %584 = vst.msk [vmem:[#allocation2] sm:$0x3] %vm106, %v580
    %586 = vrot.lane.b32.xlu0 %v571, 96
    %v587 = vpop.permute.xlu0 %586
    %589 = vst.msk [vmem:[#allocation3] sm:$0x3] %vm106, %v587
    // Predicated region
    $region22: #{encoder_forward.1} parent=1 // pred_check
      %p590 = pneg %p20
    $region23: #{encoder_forward.1} parent=1 // pred_check_branch
      %592 = sbr.rel (%p590) target = $region25
    $region24: #{encoder_forward.1} parent=1 // pred_region
      %593 = vst.msk [vmem:[#allocation4] sm:$0x3] %vm106, %v587
    $region25: #{encoder_forward.1} parent=1 // pred_fallthru
      _
    // Predicated region
    $region26: #{encoder_forward.1} parent=1 // pred_check
      _
    $region27: #{encoder_forward.1} parent=1 // pred_check_branch
      %595 = sbr.rel (0) target = $region29
    $region28: #{encoder_forward.1} parent=1 // pred_region
      _
    $region29: #{encoder_forward.1} parent=1 // pred_fallthru
      _
    // Predicated region
    $region30: #{encoder_forward.1} parent=1 // pred_check
      _
    $region31: #{encoder_forward.1} parent=1 // pred_check_branch
      %597 = sbr.rel (0) target = $region33
    $region32: #{encoder_forward.1} parent=1 // pred_region
      %599 = vsyncadd [#allocation5], 0
      %s601 = sshll.u32 [#allocation4], 4
      %s602 = int_to_ptr.vmem [resolvable:$true] %s601
      %s603 = sshll.u32 %s5, 4
      %s604 = int_to_ptr.hbm [resolvable:$true] %s603
      %606 = dma.vmem_to_hbm [thread:$0]  %s602, 32, %s604, [#allocation5]
    $region33: #{encoder_forward.1} parent=1 // pred_fallthru
      _
    // Predicated region
    $region34: #{encoder_forward.1} parent=1 // pred_check
      _
    $region35: #{encoder_forward.1} parent=1 // pred_check_branch
      %608 = sbr.rel (0) target = $region37
    $region36: #{encoder_forward.1} parent=1 // pred_region
      _
    $region37: #{encoder_forward.1} parent=1 // pred_fallthru
      _
    // Predicated region
    $region38: #{encoder_forward.1} parent=1 // pred_check
      _
    $region39: #{encoder_forward.1} parent=1 // pred_check_branch
      %610 = sbr.rel (0) target = $region41
    $region40: #{encoder_forward.1} parent=1 // pred_region
      %612 = dma.done [#allocation5], 32
    $region41: #{encoder_forward.1} parent=1 // pred_fallthru
      _
    %613 = vsyncpa [#allocation5], 1

</llo_original>
